<compile_context>
chip_gen: v7x
topology: tpu7x:2x2x1
jax: 0.10.0
libtpu: 0.0.40
codegen_flags: <defaults>
</compile_context>

<pallas_src>
import functools
from typing import NamedTuple

import jax
import jax.numpy as jnp
from jax.experimental import pallas as pl
from jax.experimental.pallas import tpu as pltpu

LANE = 128    # TPU lane width
SUB = 8       # TPU sublane width (f32)
TB_CAP = 1024 # batch-tile cap: amortizes grid overhead, stays well inside VMEM


def _round_up(x, m):
    return (x + m - 1) // m * m


# ----------------------------------------------------------------------------
# Parameter packing (do this ONCE per parameter update, not per forward call).
# ----------------------------------------------------------------------------
class PackedDQNParams(NamedTuple):
    slab: jax.Array      # (slab_rows, P) f32, zero padded, lane dense
    input_dim: int
    hidden_dim: int
    num_actions: int
    p_width: int         # P (shared padded width for hidden / action dims)
    w2_off: int
    w3_off: int
    b1_off: int
    b2_off: int
    b3_off: int


def pack_dqn_params(params):
    """Pack (w1,b1,w2,b2,w3,b3) into one lane-dense f32 slab.

    Weights are stored as (in, out), biases as (1, out) -- exact PyTorch
    nn.Linear semantics.  Every piece starts on an 8-row boundary so static
    row slices inside the kernel are tile aligned."""
    w1, b1, w2, b2, w3, b3 = params
    input_dim, hidden = w1.shape
    num_actions = w3.shape[1]
    f32 = jnp.float32

    P = max(_round_up(hidden, LANE), _round_up(num_actions, LANE))
    w1_rows = _round_up(input_dim, SUB)

    def pad2(x, rows, cols):
        return (jnp.zeros((rows, cols), f32)
                .at[:x.shape[0], :x.shape[1]].set(x.astype(f32)))

    w1_off = 0
    w2_off = w1_off + w1_rows
    w3_off = w2_off + P
    b1_off = w3_off + P
    b2_off = b1_off + SUB
    b3_off = b2_off + SUB

    slab = jnp.concatenate([
        pad2(w1, w1_rows, P),
        pad2(w2, P, P),
        pad2(w3, P, P),
        pad2(b1, SUB, P),
        pad2(b2, SUB, P),
        pad2(b3, SUB, P),
    ], axis=0)                                            # (slab_rows, P)

    return PackedDQNParams(slab, input_dim, hidden, num_actions, P,
                           w2_off, w3_off, b1_off, b2_off, b3_off)


# ----------------------------------------------------------------------------
# Kernel
# ----------------------------------------------------------------------------
def dqn_mlp_kernel(s_ref, p_ref, out_ref, *, input_dim, w2_off, w3_off,
                   b1_off, b2_off, b3_off, p_width):
    """s_ref: (TB, input_dim), p_ref: packed parameter slab (rows, P),
    out_ref: (TB, P).  All offsets/widths are Python ints (static slices)."""
    s_tile = s_ref[...]                                   # (TB, input_dim)

    # ---- layer 1 on the VPU: K=2 makes an MXU pass pure latency ----
    acc = p_ref[b1_off:b1_off + 1, :]                     # (1, P) bias row
    for i in range(input_dim):                            # static unroll
        acc = acc + s_tile[:, i:i + 1] * p_ref[i:i + 1, :]  # (TB,1)*(1,P)
    y1 = jnp.tanh(acc)                                    # (TB, P)

    # ---- layer 2 (MXU) ----
    w2 = p_ref[w2_off:w2_off + p_width, :]                # (P, P)
    b2 = p_ref[b2_off:b2_off + 1, :]                      # (1, P)
    y2 = jnp.tanh(jnp.dot(y1, w2, preferred_element_type=jnp.float32) + b2)

    # ---- layer 3 (MXU, no activation), lane-dense store ----
    w3 = p_ref[w3_off:w3_off + p_width, :]                # (P, P)
    b3 = p_ref[b3_off:b3_off + 1, :]                      # (1, P)
    out_ref[...] = (jnp.dot(y2, w3, preferred_element_type=jnp.float32)
                    + b3).astype(out_ref.dtype)


# ----------------------------------------------------------------------------
# Wrapper
# ----------------------------------------------------------------------------
def _batch_tiling(B):
    """Pick (TB, B_pad).  Prefers one big tile per core, but keeps the grid
    >= 2 whenever the batch is big enough, so the 'parallel' axis can shard
    across both TensorCores on v7x (v5e/v6e: a 2-step grid costs ~0.35 us)."""
    rows = _round_up(B, SUB)
    if rows > TB_CAP:
        tb = TB_CAP
        b_pad = _round_up(B, tb)          # grid >= 2 automatically
    elif rows >= 256:
        tb = _round_up(-(-rows // 2), SUB)  # split into exactly 2 tiles
        b_pad = 2 * tb
    else:
        tb = rows                          # tiny batch: single tile
        b_pad = rows
    return tb, b_pad


def dqn_nn_forward(s, packed: PackedDQNParams):
    """Forward pass of DQN_NN.  s: [B, input_dim]; packed: pre-packed params."""
    B, input_dim = s.shape
    assert input_dim == packed.input_dim
    f32 = jnp.float32
    P = packed.p_width
    slab = packed.slab
    slab_rows = slab.shape[0]

    TB, B_pad = _batch_tiling(B)
    n_tiles = B_pad // TB

    if B_pad == B and s.dtype == f32:
        s_pad = s
    else:
        s_pad = jnp.zeros((B_pad, input_dim), f32).at[:B, :].set(s.astype(f32))

    kernel = functools.partial(
        dqn_mlp_kernel, input_dim=input_dim,
        w2_off=packed.w2_off, w3_off=packed.w3_off,
        b1_off=packed.b1_off, b2_off=packed.b2_off, b3_off=packed.b3_off,
        p_width=P)

    # Advisory cost hint so XLA schedules the surrounding ops sensibly.
    cost = pl.CostEstimate(
        flops=2 * B_pad * P * (input_dim + 2 * P),
        transcendentals=2 * B_pad * P,
        bytes_accessed=B_pad * (input_dim + P) * 4 + int(slab.size) * 4)

    out_pad = pl.pallas_call(
        kernel,
        out_shape=jax.ShapeDtypeStruct((B_pad, P), f32),
        grid_spec=pltpu.PrefetchScalarGridSpec(
            num_scalar_prefetch=0,
            grid=(n_tiles,),
            in_specs=[
                # per-tile batch slice of the states
                pl.BlockSpec((TB, input_dim), lambda i: (i, 0)),
                # parameter slab: same block every step -> stays VMEM-resident
                pl.BlockSpec((slab_rows, P), lambda i: (0, 0)),
            ],
            out_specs=pl.BlockSpec((TB, P), lambda i: (i, 0)),
        ),
        compiler_params=pltpu.CompilerParams(
            dimension_semantics=("parallel",)),
        cost_estimate=cost,
    )(s_pad, slab)

    return out_pad[:B, :packed.num_actions]


def dqn_nn_forward_from_params(s, params):
    """Convenience wrapper: packs every call.  Prefer pack_dqn_params() once
    per parameter update + dqn_nn_forward() in hot loops."""
    return dqn_nn_forward(s, pack_dqn_params(params))


# ----------------------------------------------------------------------------
# Init + reference + self-test
# ----------------------------------------------------------------------------
def init_params(key, input_dim, hidden_dim, num_actions):
    """PyTorch nn.Linear default init: U(-1/sqrt(fan_in), 1/sqrt(fan_in)).
    Weights stored transposed as (in, out); biases as (1, out)."""
    ks = jax.random.split(key, 6)

    def linear(kw, kb, fan_in, fan_out):
        bound = 1.0 / jnp.sqrt(jnp.float32(fan_in))
        w = jax.random.uniform(kw, (fan_in, fan_out), jnp.float32, -bound, bound)
        b = jax.random.uniform(kb, (1, fan_out), jnp.float32, -bound, bound)
        return w, b

    w1, b1 = linear(ks[0], ks[1], input_dim, hidden_dim)
    w2, b2 = linear(ks[2], ks[3], hidden_dim, hidden_dim)
    w3, b3 = linear(ks[4], ks[5], hidden_dim, num_actions)
    return (w1, b1, w2, b2, w3, b3)


def reference_forward(s, params):
    """Pure-JAX reference matching the PyTorch forward."""
    w1, b1, w2, b2, w3, b3 = params
    y1 = jnp.tanh(s @ w1 + b1)
    y2 = jnp.tanh(y1 @ w2 + b2)
    return y2 @ w3 + b3


if __name__ == "__main__":
    # Pendulum: state = [theta, theta_dot] -> input_dim = 2; discretized actions.
    input_dim = 2
    hidden_dim = 64
    num_actions = 31

    key = jax.random.PRNGKey(0)
    k_s, k_p = jax.random.split(key)

    params = init_params(k_p, input_dim, hidden_dim, num_actions)
    packed = pack_dqn_params(params)   # packed ONCE, reused for every forward

    # Cover the three tiling branches: single tile, 2-way split, TB_CAP multi-tile.
    for batch in (8, 300, 2500):
        s = jax.random.normal(jax.random.fold_in(k_s, batch),
                              (batch, input_dim), dtype=jnp.float32)
        out = dqn_nn_forward(s, packed)
        out = jax.block_until_ready(out)

        ref = reference_forward(s, params)
        assert out.shape == (batch, num_actions)
        assert jnp.allclose(out, ref, atol=1e-5, rtol=1e-5), \
            f"mismatch at batch={batch}"

    print("KERNEL_OK")
</pallas_src>

<mosaic_0001>
module attributes {stable_mosaic.version = 11 : i64} {
  func.func @dqn_mlp_kernel(%arg0: i32, %arg1: memref<8x2xf32, #tpu.memory_space<vmem>>, %arg2: memref<288x128xf32, #tpu.memory_space<vmem>>, %arg3: memref<8x128xf32, #tpu.memory_space<vmem>>) attributes {dimension_semantics = [#tpu.dimension_semantics<parallel>], iteration_bounds = array<i64: 1>, scalar_prefetch = 0 : i64, scratch_operands = 0 : i64, tpu.core_type = #tpu.core_type<tc>, window_params = [{transform_indices = @transform_0, window_bounds = array<i64: 8, 2>}, {pipeline_mode = #tpu.pipeline_mode<synchronous>, transform_indices = @transform_1, window_bounds = array<i64: 288, 128>}, {transform_indices = @transform_2, window_bounds = array<i64: 8, 128>}]} {
    %c0 = arith.constant 0 : index
    %c0_0 = arith.constant 0 : index
    %0 = vector.load %arg1[%c0, %c0_0] : memref<8x2xf32, #tpu.memory_space<vmem>>, vector<8x2xf32>
    %c264 = arith.constant 264 : index
    %c0_1 = arith.constant 0 : index
    %1 = vector.load %arg2[%c264, %c0_1] : memref<288x128xf32, #tpu.memory_space<vmem>>, vector<1x128xf32>
    %2 = vector.extract_strided_slice %0 {offsets = [0, 0], sizes = [8, 1], strides = [1, 1]} : vector<8x2xf32> to vector<8x1xf32>
    %c0_2 = arith.constant 0 : index
    %c0_3 = arith.constant 0 : index
    %3 = vector.load %arg2[%c0_2, %c0_3] : memref<288x128xf32, #tpu.memory_space<vmem>>, vector<1x128xf32>
    %4 = vector.broadcast %2 : vector<8x1xf32> to vector<8x128xf32>
    %5 = vector.broadcast %3 : vector<1x128xf32> to vector<8x128xf32>
    %6 = arith.mulf %4, %5 : vector<8x128xf32>
    %7 = vector.broadcast %1 : vector<1x128xf32> to vector<8x128xf32>
    %8 = arith.addf %7, %6 : vector<8x128xf32>
    %9 = vector.extract_strided_slice %0 {offsets = [0, 1], sizes = [8, 1], strides = [1, 1]} : vector<8x2xf32> to vector<8x1xf32>
    %c1 = arith.constant 1 : index
    %c0_4 = arith.constant 0 : index
    %10 = vector.load %arg2[%c1, %c0_4] : memref<288x128xf32, #tpu.memory_space<vmem>>, vector<1x128xf32>
    %11 = vector.broadcast %9 : vector<8x1xf32> to vector<8x128xf32>
    %12 = vector.broadcast %10 : vector<1x128xf32> to vector<8x128xf32>
    %13 = arith.mulf %11, %12 : vector<8x128xf32>
    %14 = arith.addf %8, %13 : vector<8x128xf32>
    %15 = math.tanh %14 : vector<8x128xf32>
    %c8 = arith.constant 8 : index
    %c0_5 = arith.constant 0 : index
    %16 = vector.load %arg2[%c8, %c0_5] : memref<288x128xf32, #tpu.memory_space<vmem>>, vector<128x128xf32>
    %c272 = arith.constant 272 : index
    %c0_6 = arith.constant 0 : index
    %17 = vector.load %arg2[%c272, %c0_6] : memref<288x128xf32, #tpu.memory_space<vmem>>, vector<1x128xf32>
    %cst = arith.constant dense<0.000000e+00> : vector<8x128xf32>
    %18 = tpu.matmul %15, %16, %cst {dimension_numbers = #tpu.dot_dimension_numbers<[1], [0], [0], [1], [0, 0, 1, 1], [], []>} : vector<8x128xf32>, vector<128x128xf32>, vector<8x128xf32> -> vector<8x128xf32>
    %19 = vector.broadcast %17 : vector<1x128xf32> to vector<8x128xf32>
    %20 = arith.addf %18, %19 : vector<8x128xf32>
    %21 = math.tanh %20 : vector<8x128xf32>
    %c136 = arith.constant 136 : index
    %c0_7 = arith.constant 0 : index
    %22 = vector.load %arg2[%c136, %c0_7] : memref<288x128xf32, #tpu.memory_space<vmem>>, vector<128x128xf32>
    %c280 = arith.constant 280 : index
    %c0_8 = arith.constant 0 : index
    %23 = vector.load %arg2[%c280, %c0_8] : memref<288x128xf32, #tpu.memory_space<vmem>>, vector<1x128xf32>
    %cst_9 = arith.constant dense<0.000000e+00> : vector<8x128xf32>
    %24 = tpu.matmul %21, %22, %cst_9 {dimension_numbers = #tpu.dot_dimension_numbers<[1], [0], [0], [1], [0, 0, 1, 1], [], []>} : vector<8x128xf32>, vector<128x128xf32>, vector<8x128xf32> -> vector<8x128xf32>
    %25 = vector.broadcast %23 : vector<1x128xf32> to vector<8x128xf32>
    %26 = arith.addf %24, %25 : vector<8x128xf32>
    %c0_10 = arith.constant 0 : index
    %c0_11 = arith.constant 0 : index
    %27 = vector.load %arg3[%c0_10, %c0_11] : memref<8x128xf32, #tpu.memory_space<vmem>>, vector<8x128xf32>
    tpu.vector_store %arg3[%c0_10, %c0_11], %26 {strides = array<i32>} : memref<8x128xf32, #tpu.memory_space<vmem>>, vector<8x128xf32>,
    return
  }
  func.func @transform_0(%arg0: i32) -> (i32, i32) {
    %c0_i32 = arith.constant 0 : i32
    %c0_i32_0 = arith.constant 0 : i32
    return %arg0, %c0_i32 : i32, i32
  }
  func.func @transform_1(%arg0: i32) -> (i32, i32) {
    %c0_i32 = arith.constant 0 : i32
    %c0_i32_0 = arith.constant 0 : i32
    %c0_i32_1 = arith.constant 0 : i32
    return %c0_i32, %c0_i32_0 : i32, i32
  }
  func.func @transform_2(%arg0: i32) -> (i32, i32) {
    %c0_i32 = arith.constant 0 : i32
    %c0_i32_0 = arith.constant 0 : i32
    return %arg0, %c0_i32 : i32, i32
  }
}

</mosaic_0001>

<llo_original>
// kernel: tpu_custom_call.1
$region0: #{tpu_custom_call.1}
  #allocation0 [shape = 'u32[]', space=smem, size = 0x4, offset = 0x4, fixed_abs, tag = 'smem constant byte address 0x4 - core index']
  #allocation1 [shape = 'u32[144,128]{1,0:T(1,128)}', space=vmem, size = 0x12000, scoped, tag = 'internal scratch']
  %s0 = inlined_call_operand.vmem [shape: f32[8,2], index: 0, kind: input, shape index: {}]
  %s1 = inlined_call_operand.hbm [shape: f32[288,128], index: 1, kind: input, shape index: {}]
  %s2 = inlined_call_operand.hbm [shape: f32[8,128], index: 2, kind: output, shape index: {}]
  %s3 = sld [smem:[#allocation0]]
  $region22: #{tpu_custom_call.1} parent=0
    _
  %s5 = ssub.s32 1, %s3
  %s6 = scalar_select 0, %s5, %s3
  $region1: #{tpu_custom_call.1} parent=0
    #allocation2 [shape = 'u8[147456]{0}', space=vmem, size = 0x24000, scoped, tag = 'input window, operand 1, single buffered']
    #allocation3 [shape = 's32[1]{0}', space=sflag, size = 0x4, scoped, tag = 'scoped memory for tpu_custom_call.1']
    #allocation4 [shape = 's32[1]{0}', space=sflag, size = 0x4, scoped, tag = 'scoped memory for tpu_custom_call.1']
    #allocation5 [shape = 'u8[4096]{0}', space=vmem, size = 0x1000, scoped, tag = 'output window, operand 0, single buffered']
    %7 = vsyncpa [#allocation3], 0
    %8 = vsyncpa [#allocation4], 0
    // Predicated region
    $region2: #{tpu_custom_call.1} parent=1 // pred_check
      _
    $region3: #{tpu_custom_call.1} parent=1 // pred_check_branch
      %10 = sbr.rel (0) target = $region5
    $region4: #{tpu_custom_call.1} parent=1 // pred_region
      _
    $region5: #{tpu_custom_call.1} parent=1 // pred_fallthru
      _
    // Predicated region
    $region6: #{tpu_custom_call.1} parent=1 // pred_check
      _
    $region7: #{tpu_custom_call.1} parent=1 // pred_check_branch
      %12 = sbr.rel (0) target = $region9
    $region8: #{tpu_custom_call.1} parent=1 // pred_region
      %s14 = ssub.s32 4608, 4608
      %15 = vsyncadd [#allocation3], %s14
      %s16 = sshll.u32 [#allocation2], 4
      %s17 = int_to_ptr.vmem [resolvable:$true] %s16
      %22 = dma.hbm_to_vmem [thread:$0]  %s1, 4608, %s17, [#allocation3], 128, 128, 8
    $region9: #{tpu_custom_call.1} parent=1 // pred_fallthru
      _
    // Predicated region
    $region10: #{tpu_custom_call.1} parent=1 // pred_check
      _
    $region11: #{tpu_custom_call.1} parent=1 // pred_check_branch
      %24 = sbr.rel (0) target = $region13
    $region12: #{tpu_custom_call.1} parent=1 // pred_region
      %25 = dma.done [#allocation3], 4608
    $region13: #{tpu_custom_call.1} parent=1 // pred_fallthru
      _
    %v26 = vld [vmem:[%s0] sm:$0xff]
    %v27 = vld [vmem:[#allocation2 + $0x108] sm:$0x1]
    %v28 = vld [vmem:[#allocation2] sm:$0x1]
    %30 = vset.pattern.permute.xlu0 0
    %31 = vperm.xlu0 %30, %v26
    %v32 = vpop.permute.xlu0 %31
    %v34 = vlaneseq
    %v35 = vshrl.u32 %v34, 7
    %v36 = vsub.s32 0, %v35
    %v37 = vrot.slane %v28, %v36
    %v38 = vmul.f32 %v32, %v37
    %v39 = vlaneseq
    %v40 = vshrl.u32 %v39, 7
    %v41 = vsub.s32 0, %v40
    %v42 = vrot.slane %v27, %v41
    %v43 = vadd.f32 %v42, %v38
    %v44 = vld [vmem:[#allocation2 + $0x1] sm:$0x1]
    %45 = vset.pattern.permute.xlu0 1
    %46 = vperm.xlu0 %45, %v26
    %v47 = vpop.permute.xlu0 %46
    %v49 = vlaneseq
    %v50 = vshrl.u32 %v49, 7
    %v51 = vsub.s32 0, %v50
    %v52 = vrot.slane %v44, %v51
    %v53 = vmul.f32 %v47, %v52
    %v54 = vadd.f32 %v43, %v53
    %v55 = vtanh.pop %v54
    %v56 = vld [vmem:[#allocation2 + $0x8] sm:$0xff]
    %v57 = vld [vmem:[#allocation2 + $0x10] sm:$0xff]
    %v58 = vld [vmem:[#allocation2 + $0x18] sm:$0xff]
    %v59 = vld [vmem:[#allocation2 + $0x20] sm:$0xff]
    %v60 = vld [vmem:[#allocation2 + $0x28] sm:$0xff]
    %v61 = vld [vmem:[#allocation2 + $0x30] sm:$0xff]
    %v62 = vld [vmem:[#allocation2 + $0x38] sm:$0xff]
    %v63 = vld [vmem:[#allocation2 + $0x40] sm:$0xff]
    %v64 = vld [vmem:[#allocation2 + $0x48] sm:$0xff]
    %v65 = vld [vmem:[#allocation2 + $0x50] sm:$0xff]
    %v66 = vld [vmem:[#allocation2 + $0x58] sm:$0xff]
    %v67 = vld [vmem:[#allocation2 + $0x60] sm:$0xff]
    %v68 = vld [vmem:[#allocation2 + $0x68] sm:$0xff]
    %v69 = vld [vmem:[#allocation2 + $0x70] sm:$0xff]
    %v70 = vld [vmem:[#allocation2 + $0x78] sm:$0xff]
    %v71 = vld [vmem:[#allocation2 + $0x80] sm:$0xff]
    %v72 = vld [vmem:[#allocation2 + $0x110] sm:$0x1]
    %v73 = vlaneseq
    %v74 = vshrl.u32 %v73, 7
    %v75 = vsub.s32 0, %v74
    %v76 = vrot.slane %v72, %v75
    %77 = vmatprep.subr.mxu0 0.0
    %78 = vmatpush1.msra.mxu0 %v56
    %79 = vmatprep.subr.mxu0 0.0
    %80 = vmatpush1.msra.mxu0 %v57
    %81 = vmatprep.subr.mxu0 0.0
    %82 = vmatpush1.msra.mxu0 %v58
    %83 = vmatprep.subr.mxu0 0.0
    %84 = vmatpush1.msra.mxu0 %v59
    %85 = vmatprep.subr.mxu0 0.0
    %86 = vmatpush1.msra.mxu0 %v60
    %87 = vmatprep.subr.mxu0 0.0
    %88 = vmatpush1.msra.mxu0 %v61
    %89 = vmatprep.subr.mxu0 0.0
    %90 = vmatpush1.msra.mxu0 %v62
    %91 = vmatprep.subr.mxu0 0.0
    %92 = vmatpush1.msra.mxu0 %v63
    %93 = vmatprep.subr.mxu0 0.0
    %94 = vmatpush1.msra.mxu0 %v64
    %95 = vmatprep.subr.mxu0 0.0
    %96 = vmatpush1.msra.mxu0 %v65
    %97 = vmatprep.subr.mxu0 0.0
    %98 = vmatpush1.msra.mxu0 %v66
    %99 = vmatprep.subr.mxu0 0.0
    %100 = vmatpush1.msra.mxu0 %v67
    %101 = vmatprep.subr.mxu0 0.0
    %102 = vmatpush1.msra.mxu0 %v68
    %103 = vmatprep.subr.mxu0 0.0
    %104 = vmatpush1.msra.mxu0 %v69
    %105 = vmatprep.subr.mxu0 0.0
    %106 = vmatpush1.msra.mxu0 %v70
    %107 = vmatprep.subr.mxu0 0.0
    %108 = vmatpush1.msra.mxu0 %v71
    %109 = vmatprep.subr.mxu0 0.0
    %110 = vmatpush1.msra.mxu0 0.0
    %111 = vmatprep.subr.mxu0 0.0
    %112 = vmatpush1.msra.mxu0 0.0
    %113 = vmatprep.subr.mxu0 0.0
    %114 = vmatpush1.msra.mxu0 0.0
    %115 = vmatprep.subr.mxu0 0.0
    %116 = vmatpush1.msra.mxu0 0.0
    %117 = vmatprep.subr.mxu0 0.0
    %118 = vmatpush1.msra.mxu0 0.0
    %119 = vmatprep.subr.mxu0 0.0
    %120 = vmatpush1.msra.mxu0 0.0
    %121 = vmatprep.subr.mxu0 0.0
    %122 = vmatpush1.msra.mxu0 0.0
    %123 = vmatprep.subr.mxu0 0.0
    %124 = vmatpush1.msra.mxu0 0.0
    %125 = vmatprep.subr.mxu0 0.0
    %126 = vmatpush1.msra.mxu0 0.0
    %127 = vmatprep.subr.mxu0 0.0
    %128 = vmatpush1.msra.mxu0 0.0
    %129 = vmatprep.subr.mxu0 0.0
    %130 = vmatpush1.msra.mxu0 0.0
    %131 = vmatprep.subr.mxu0 0.0
    %132 = vmatpush1.msra.mxu0 0.0
    %133 = vmatprep.subr.mxu0 0.0
    %134 = vmatpush1.msra.mxu0 0.0
    %135 = vmatprep.subr.mxu0 0.0
    %136 = vmatpush1.msra.mxu0 0.0
    %137 = vmatprep.subr.mxu0 0.0
    %138 = vmatpush1.msra.mxu0 0.0
    %139 = vmatprep.subr.mxu0 0.0
    %140 = vmatpush1.msra.mxu0 0.0
    %141 = vmatprep.mubr.f32.mxu0 0.0
    %142 = vmatmul.mubr.f32.gmra.mrb[0].mxu0 %v55
    %v143 = vpop.f32.mrb[0].mxu0
    %v144 = vadd.f32 %v76, %v143
    %v145 = vpop.f32.mrb[0].mxu0
    %146 = vdwg.mxu0
    %v147 = vtanh.pop %v144
    %v148 = vld [vmem:[#allocation2 + $0x88] sm:$0xff]
    %v149 = vld [vmem:[#allocation2 + $0x90] sm:$0xff]
    %v150 = vld [vmem:[#allocation2 + $0x98] sm:$0xff]
    %v151 = vld [vmem:[#allocation2 + $0xa0] sm:$0xff]
    %v152 = vld [vmem:[#allocation2 + $0xa8] sm:$0xff]
    %v153 = vld [vmem:[#allocation2 + $0xb0] sm:$0xff]
    %v154 = vld [vmem:[#allocation2 + $0xb8] sm:$0xff]
    %v155 = vld [vmem:[#allocation2 + $0xc0] sm:$0xff]
    %v156 = vld [vmem:[#allocation2 + $0xc8] sm:$0xff]
    %v157 = vld [vmem:[#allocation2 + $0xd0] sm:$0xff]
    %v158 = vld [vmem:[#allocation2 + $0xd8] sm:$0xff]
    %v159 = vld [vmem:[#allocation2 + $0xe0] sm:$0xff]
    %v160 = vld [vmem:[#allocation2 + $0xe8] sm:$0xff]
    %v161 = vld [vmem:[#allocation2 + $0xf0] sm:$0xff]
    %v162 = vld [vmem:[#allocation2 + $0xf8] sm:$0xff]
    %v163 = vld [vmem:[#allocation2 + $0x100] sm:$0xff]
    %v164 = vld [vmem:[#allocation2 + $0x118] sm:$0x1]
    %v165 = vlaneseq
    %v166 = vshrl.u32 %v165, 7
    %v167 = vsub.s32 0, %v166
    %v168 = vrot.slane %v164, %v167
    %169 = vmatprep.subr.mxu0 0.0
    %170 = vmatpush1.msra.mxu0 %v148
    %171 = vmatprep.subr.mxu0 0.0
    %172 = vmatpush1.msra.mxu0 %v149
    %173 = vmatprep.subr.mxu0 0.0
    %174 = vmatpush1.msra.mxu0 %v150
    %175 = vmatprep.subr.mxu0 0.0
    %176 = vmatpush1.msra.mxu0 %v151
    %177 = vmatprep.subr.mxu0 0.0
    %178 = vmatpush1.msra.mxu0 %v152
    %179 = vmatprep.subr.mxu0 0.0
    %180 = vmatpush1.msra.mxu0 %v153
    %181 = vmatprep.subr.mxu0 0.0
    %182 = vmatpush1.msra.mxu0 %v154
    %183 = vmatprep.subr.mxu0 0.0
    %184 = vmatpush1.msra.mxu0 %v155
    %185 = vmatprep.subr.mxu0 0.0
    %186 = vmatpush1.msra.mxu0 %v156
    %187 = vmatprep.subr.mxu0 0.0
    %188 = vmatpush1.msra.mxu0 %v157
    %189 = vmatprep.subr.mxu0 0.0
    %190 = vmatpush1.msra.mxu0 %v158
    %191 = vmatprep.subr.mxu0 0.0
    %192 = vmatpush1.msra.mxu0 %v159
    %193 = vmatprep.subr.mxu0 0.0
    %194 = vmatpush1.msra.mxu0 %v160
    %195 = vmatprep.subr.mxu0 0.0
    %196 = vmatpush1.msra.mxu0 %v161
    %197 = vmatprep.subr.mxu0 0.0
    %198 = vmatpush1.msra.mxu0 %v162
    %199 = vmatprep.subr.mxu0 0.0
    %200 = vmatpush1.msra.mxu0 %v163
    %201 = vmatprep.subr.mxu0 0.0
    %202 = vmatpush1.msra.mxu0 0.0
    %203 = vmatprep.subr.mxu0 0.0
    %204 = vmatpush1.msra.mxu0 0.0
    %205 = vmatprep.subr.mxu0 0.0
    %206 = vmatpush1.msra.mxu0 0.0
    %207 = vmatprep.subr.mxu0 0.0
    %208 = vmatpush1.msra.mxu0 0.0
    %209 = vmatprep.subr.mxu0 0.0
    %210 = vmatpush1.msra.mxu0 0.0
    %211 = vmatprep.subr.mxu0 0.0
    %212 = vmatpush1.msra.mxu0 0.0
    %213 = vmatprep.subr.mxu0 0.0
    %214 = vmatpush1.msra.mxu0 0.0
    %215 = vmatprep.subr.mxu0 0.0
    %216 = vmatpush1.msra.mxu0 0.0
    %217 = vmatprep.subr.mxu0 0.0
    %218 = vmatpush1.msra.mxu0 0.0
    %219 = vmatprep.subr.mxu0 0.0
    %220 = vmatpush1.msra.mxu0 0.0
    %221 = vmatprep.subr.mxu0 0.0
    %222 = vmatpush1.msra.mxu0 0.0
    %223 = vmatprep.subr.mxu0 0.0
    %224 = vmatpush1.msra.mxu0 0.0
    %225 = vmatprep.subr.mxu0 0.0
    %226 = vmatpush1.msra.mxu0 0.0
    %227 = vmatprep.subr.mxu0 0.0
    %228 = vmatpush1.msra.mxu0 0.0
    %229 = vmatprep.subr.mxu0 0.0
    %230 = vmatpush1.msra.mxu0 0.0
    %231 = vmatprep.subr.mxu0 0.0
    %232 = vmatpush1.msra.mxu0 0.0
    %233 = vmatprep.mubr.f32.mxu0 0.0
    %234 = vmatmul.mubr.f32.gmra.mrb[0].mxu0 %v147
    %v235 = vpop.f32.mrb[0].mxu0
    %v236 = vadd.f32 %v168, %v235
    %v237 = vpop.f32.mrb[0].mxu0
    %238 = vdwg.mxu0
    %239 = vst [vmem:[#allocation5] sm:$0xff] %v236
    // Predicated region
    $region14: #{tpu_custom_call.1} parent=1 // pred_check
      _
    $region15: #{tpu_custom_call.1} parent=1 // pred_check_branch
      %241 = sbr.rel (0) target = $region17
    $region16: #{tpu_custom_call.1} parent=1 // pred_region
      %s243 = ssub.s32 128, 128
      %244 = vsyncadd [#allocation4], %s243
      %s246 = sshll.u32 [#allocation5], 4
      %s247 = int_to_ptr.vmem [resolvable:$true] %s246
      %249 = dma.vmem_to_hbm [thread:$0]  %s247, 128, %s2, [#allocation4]
    $region17: #{tpu_custom_call.1} parent=1 // pred_fallthru
      _
    // Predicated region
    $region18: #{tpu_custom_call.1} parent=1 // pred_check
      _
    $region19: #{tpu_custom_call.1} parent=1 // pred_check_branch
      %251 = sbr.rel (0) target = $region21
    $region20: #{tpu_custom_call.1} parent=1 // pred_region
      %252 = dma.done [#allocation4], 128
    $region21: #{tpu_custom_call.1} parent=1 // pred_fallthru
      _
    %253 = vsyncpa [#allocation3], 1
    %254 = vsyncpa [#allocation4], 1

</llo_original>
